<compile_context>
chip_gen: v6e
topology: v6e:2x2x1
jax: 0.10.0
libtpu: 0.0.40
codegen_flags: <defaults>
</compile_context>

<pallas_src>
import math

import jax
import jax.numpy as jnp
from jax.experimental import pallas as pl
from jax.experimental.pallas import tpu as pltpu


# ----------------------------- sizing helpers ------------------------------

def _vmem_budget():
    """(per-block byte target, scoped vmem_limit_bytes), generation aware."""
    cap = None
    try:
        info = pltpu.get_tpu_info()
        cap = getattr(info, "vmem_capacity_bytes", None)
    except Exception:
        cap = None
    if cap is not None and int(cap) >= 100 * 1024 * 1024:
        # v5e / v6e: 128 MiB physical VMEM -> bigger blocks, raised scoped limit.
        return 10 * 1024 * 1024, 64 * 1024 * 1024
    # v7x (64 MiB per TC) or unknown: conservative.
    return 6 * 1024 * 1024, 32 * 1024 * 1024


def _choose_batch_block(N, bytes_per_batch, target_bytes):
    """Largest Bn dividing N under the byte budget; prefer even grid >= 4."""
    cap = max(1, target_bytes // max(1, bytes_per_batch))
    divs = [d for d in range(1, N + 1) if N % d == 0]
    fits = [d for d in divs if d <= cap] or [1]
    even4 = [d for d in fits if (N // d) >= 4 and (N // d) % 2 == 0]
    even2 = [d for d in fits if (N // d) >= 2 and (N // d) % 2 == 0]
    pool = even4 or even2 or fits
    return max(pool)


def _choose_hw_chunk(HW, C, itemsize, target_bytes):
    """Lane-dense (multiple-of-128) HW chunk under the byte budget."""
    max_lanes = (target_bytes // max(1, C * itemsize)) // 128 * 128
    max_lanes = max(128, max_lanes)
    padded_hw = ((HW + 127) // 128) * 128
    chunk = min(max_lanes, padded_hw)
    # Prefer an exact multiple-of-128 divisor of HW (no edge masking needed).
    for d in range(chunk, 127, -128):
        if HW % d == 0:
            return d
    return chunk


# ------------------------------ fused kernel -------------------------------

def _eca_fused_kernel_factory(C, HW, k_size):
    pad = (k_size - 1) // 2
    inv_hw = 1.0 / float(HW)

    def kernel(x_ref, w_ref, o_ref):
        # Global average pool over H*W: lane-axis reduction with f32 accum,
        # reading x_ref directly (no full-block value kept live).
        y = jnp.sum(x_ref[...], axis=-1, dtype=jnp.float32) * inv_hw   # (Bn, C)

        # k-tap 'same' cross-correlation over channels, no bias.  Operates only
        # on the tiny pooled vector -> negligible vs. the streaming multiply.
        yp = jnp.pad(y, ((0, 0), (pad, pad)))                          # (Bn, C+2p)
        acc = jnp.zeros_like(y)
        for j in range(k_size):                                        # static, small
            acc = acc + w_ref[j] * yp[:, j:j + C]

        # Sigmoid gate, then re-read x_ref so the scale pass streams
        # vld -> vmul -> vst without a resident full-block temp.
        s = jax.nn.sigmoid(acc).astype(o_ref.dtype)                    # (Bn, C)
        o_ref[...] = x_ref[...] * s[:, :, None]

    return kernel


def _eca_fused(x_flat, w, k_size, target_bytes, vmem_limit, donate_input):
    N, C, HW = x_flat.shape
    itemsize = jnp.dtype(x_flat.dtype).itemsize
    bn = _choose_batch_block(N, C * HW * itemsize, target_bytes)
    grid = (N // bn,)

    return pl.pallas_call(
        _eca_fused_kernel_factory(C, HW, k_size),
        out_shape=jax.ShapeDtypeStruct((N, C, HW), x_flat.dtype),
        grid=grid,
        in_specs=[
            pl.BlockSpec((bn, C, HW), lambda n: (n, 0, 0)),
            pl.BlockSpec(memory_space=pltpu.SMEM),
        ],
        out_specs=pl.BlockSpec((bn, C, HW), lambda n: (n, 0, 0)),
        compiler_params=pltpu.CompilerParams(
            dimension_semantics=("parallel",),
            vmem_limit_bytes=vmem_limit),
        cost_estimate=pl.CostEstimate(
            flops=3 * N * C * HW,                        # pool + scale (approx)
            transcendentals=N * C,                       # sigmoid exp
            bytes_accessed=2 * N * C * HW * itemsize),   # read x + write out
        input_output_aliases={0: 0} if donate_input else {},
    )(x_flat, w)


# -------------------------- HW-split fallback path -------------------------

def _pool_kernel_factory(C, HW, hw_chunk):
    inv_hw = 1.0 / float(HW)
    ragged = (HW % hw_chunk) != 0

    def kernel(x_ref, p_ref):
        h = pl.program_id(1)

        @pl.when(h == 0)
        def _():
            p_ref[...] = jnp.zeros_like(p_ref)

        x = x_ref[...]                                       # (1, C, hw_chunk)
        if ragged:
            lane = jax.lax.broadcasted_iota(jnp.int32, x.shape, 2)
            x = jnp.where(h * hw_chunk + lane < HW, x, jnp.zeros_like(x))
        p_ref[...] += jnp.sum(x, axis=-1, keepdims=True, dtype=jnp.float32)

        @pl.when(h == pl.num_programs(1) - 1)
        def _():
            p_ref[...] *= inv_hw

    return kernel


def _scale_kernel(x_ref, g_ref, o_ref):
    o_ref[...] = x_ref[...] * g_ref[...]


def _eca_hw_split(x_flat, w, k_size, target_bytes, vmem_limit, donate_input):
    N, C, HW = x_flat.shape
    itemsize = jnp.dtype(x_flat.dtype).itemsize
    pad = (k_size - 1) // 2
    hw_chunk = _choose_hw_chunk(HW, C, itemsize, target_bytes)
    n_chunks = pl.cdiv(HW, hw_chunk)

    # Pass 1: HW-chunked global-average pool; the (1, C, 1) f32 output block
    # stays resident across the 'arbitrary' chunk axis and accumulates.
    pooled = pl.pallas_call(
        _pool_kernel_factory(C, HW, hw_chunk),
        out_shape=jax.ShapeDtypeStruct((N, C, 1), jnp.float32),
        grid=(N, n_chunks),
        in_specs=[pl.BlockSpec((1, C, hw_chunk), lambda n, h: (n, 0, h))],
        out_specs=pl.BlockSpec((1, C, 1), lambda n, h: (n, 0, 0)),
        compiler_params=pltpu.CompilerParams(
            dimension_semantics=("parallel", "arbitrary"),
            vmem_limit_bytes=vmem_limit),
        cost_estimate=pl.CostEstimate(
            flops=N * C * HW,
            transcendentals=0,
            bytes_accessed=N * C * HW * itemsize),
    )(x_flat)

    # Tiny (N, C) gate math off the streaming path: k-tap conv + sigmoid.
    y = pooled[:, :, 0]                                       # (N, C) f32
    yp = jnp.pad(y, ((0, 0), (pad, pad)))
    conv = sum(w[j] * yp[:, j:j + C] for j in range(k_size))
    gate = jax.nn.sigmoid(conv).astype(x_flat.dtype).reshape(N, C, 1)

    # Pass 2: HW-chunked lane-dense scale (both grid axes independent).
    return pl.pallas_call(
        _scale_kernel,
        out_shape=jax.ShapeDtypeStruct((N, C, HW), x_flat.dtype),
        grid=(N, n_chunks),
        in_specs=[
            pl.BlockSpec((1, C, hw_chunk), lambda n, h: (n, 0, h)),
            pl.BlockSpec((1, C, 1), lambda n, h: (n, 0, 0)),
        ],
        out_specs=pl.BlockSpec((1, C, hw_chunk), lambda n, h: (n, 0, h)),
        compiler_params=pltpu.CompilerParams(
            dimension_semantics=("parallel", "parallel"),
            vmem_limit_bytes=vmem_limit),
        cost_estimate=pl.CostEstimate(
            flops=N * C * HW,
            transcendentals=0,
            bytes_accessed=2 * N * C * HW * itemsize),
        input_output_aliases={0: 0} if donate_input else {},
    )(x_flat, gate)


# --------------------------------- wrapper ---------------------------------

def eca_layer(x, w, *, max_block_bytes=None, donate_input=False):
    """ECA forward.  x: (N, C, H, W); w: (k_size,) Conv1d(1,1,k,bias=False) weight."""
    N, C, H, W = x.shape
    HW = H * W
    k_size = int(w.shape[0])
    itemsize = jnp.dtype(x.dtype).itemsize

    target_bytes, vmem_limit = _vmem_budget()
    if max_block_bytes is not None:
        target_bytes = int(max_block_bytes)

    x_flat = x.reshape(N, C, HW)   # lane-dense when HW % 128 == 0 (free reshape)
    # TODO(synk): for NHWC models with ragged HW (49/196/784/...), a C-on-lanes
    # (bn, HW, C) layout avoids masked stores; not taken here since the spec is
    # NCHW and a wrapper transpose would add a full HBM pass on a mem-bound op.
    # TODO(synk): N=1 with a small slab still runs as a single grid step (no
    # megacore split); the HW-split path below covers the large-slab case.

    if C * HW * itemsize <= target_bytes:
        out_flat = _eca_fused(x_flat, w, k_size, target_bytes, vmem_limit,
                              donate_input)
    else:
        out_flat = _eca_hw_split(x_flat, w, k_size, target_bytes, vmem_limit,
                                 donate_input)
    return out_flat.reshape(N, C, H, W)


def eca_reference(x, w):
    """Pure-JAX reference matching the PyTorch forward."""
    N, C, H, W = x.shape
    k = w.shape[0]
    pad = (k - 1) // 2
    y = jnp.mean(x, axis=(2, 3))                            # (N, C)
    yp = jnp.pad(y, ((0, 0), (pad, pad)))
    conv = sum(w[j] * yp[:, j:j + C] for j in range(k))     # (N, C)
    s = jax.nn.sigmoid(conv).reshape(N, C, 1, 1)
    return x * s


def _k_size(channels, gamma=1, b=1):
    t = int(abs((math.log(channels, 2) + b) / gamma))
    return t if t % 2 else t + 1


if __name__ == "__main__":
    key = jax.random.PRNGKey(0)
    k1, k2, k3, k4 = jax.random.split(key, 4)

    # --- Test 1: fused single-pass path (N=2, C=4, H=W=16 -> k_size=3) ---
    N, C, H, W = 2, 4, 16, 16
    ks = _k_size(C)
    bound = 1.0 / math.sqrt(ks)
    x = jax.random.normal(k1, (N, C, H, W), dtype=jnp.float32)
    w = jax.random.uniform(k2, (ks,), dtype=jnp.float32, minval=-bound, maxval=bound)

    out = jax.block_until_ready(eca_layer(x, w))
    ref = eca_reference(x, w)
    assert jnp.allclose(out, ref, atol=1e-5, rtol=1e-5), "fused path mismatch"

    # --- Test 2: HW-split fallback path (forced via a tiny block budget) ---
    N2, C2, H2, W2 = 1, 8, 24, 24                   # HW=576: ragged vs. 128 lanes
    ks2 = _k_size(C2)                               # -> 5
    bound2 = 1.0 / math.sqrt(ks2)
    x2 = jax.random.normal(k3, (N2, C2, H2, W2), dtype=jnp.float32)
    w2 = jax.random.uniform(k4, (ks2,), dtype=jnp.float32, minval=-bound2, maxval=bound2)

    out2 = jax.block_until_ready(eca_layer(x2, w2, max_block_bytes=8 * 1024))
    ref2 = eca_reference(x2, w2)
    assert jnp.allclose(out2, ref2, atol=1e-5, rtol=1e-5), "hw-split path mismatch"

    print("KERNEL_OK")
</pallas_src>

<mosaic_0001>
module attributes {stable_mosaic.version = 11 : i64} {
  func.func @kernel(%arg0: i32, %arg1: memref<1x4x256xf32, #tpu.memory_space<vmem>>, %arg2: memref<3xf32, #tpu.memory_space<smem>>, %arg3: memref<1x4x256xf32, #tpu.memory_space<vmem>>) attributes {dimension_semantics = [#tpu.dimension_semantics<parallel>], iteration_bounds = array<i64: 2>, scalar_prefetch = 0 : i64, scratch_operands = 0 : i64, tpu.core_type = #tpu.core_type<tc>, window_params = [{transform_indices = @transform_0, window_bounds = array<i64: 1, 4, 256>}, {transform_indices = @transform_1, window_bounds = array<i64: 3>}, {transform_indices = @transform_2, window_bounds = array<i64: 1, 4, 256>}]} {
    %c0 = arith.constant 0 : index
    %c0_0 = arith.constant 0 : index
    %c0_1 = arith.constant 0 : index
    %0 = vector.load %arg1[%c0, %c0_0, %c0_1] : memref<1x4x256xf32, #tpu.memory_space<vmem>>, vector<1x4x256xf32>
    %cst = arith.constant dense<0.000000e+00> : vector<1x4xf32>
    %1 = vector.multi_reduction <add>, %0, %cst [2] : vector<1x4x256xf32> to vector<1x4xf32>
    %cst_2 = arith.constant 3.906250e-03 : f32
    %2 = vector.broadcast %cst_2 : f32 to vector<1x4xf32>
    %3 = arith.mulf %1, %2 : vector<1x4xf32>
    %c0_i32 = arith.constant 0 : i32
    %4 = arith.sitofp %c0_i32 : i32 to f32
    %5 = vector.broadcast %4 : f32 to vector<1x1xf32>
    %6 = tpu.concatenate %5, %3 in 1 : vector<1x1xf32>, vector<1x4xf32> -> vector<1x5xf32>
    %7 = vector.broadcast %4 : f32 to vector<1x1xf32>
    %8 = tpu.concatenate %6, %7 in 1 : vector<1x5xf32>, vector<1x1xf32> -> vector<1x6xf32>
    %cst_3 = arith.constant 0.000000e+00 : f32
    %9 = vector.broadcast %cst_3 : f32 to vector<1x4xf32>
    %c0_4 = arith.constant 0 : index
    %10 = memref.load %arg2[%c0_4] : memref<3xf32, #tpu.memory_space<smem>>
    %11 = vector.extract_strided_slice %8 {offsets = [0, 0], sizes = [1, 4], strides = [1, 1]} : vector<1x6xf32> to vector<1x4xf32>
    %12 = vector.broadcast %10 : f32 to vector<1x4xf32>
    %13 = arith.mulf %12, %11 : vector<1x4xf32>
    %14 = arith.addf %9, %13 : vector<1x4xf32>
    %c1 = arith.constant 1 : index
    %15 = memref.load %arg2[%c1] : memref<3xf32, #tpu.memory_space<smem>>
    %16 = vector.extract_strided_slice %8 {offsets = [0, 1], sizes = [1, 4], strides = [1, 1]} : vector<1x6xf32> to vector<1x4xf32>
    %17 = vector.broadcast %15 : f32 to vector<1x4xf32>
    %18 = arith.mulf %17, %16 : vector<1x4xf32>
    %19 = arith.addf %14, %18 : vector<1x4xf32>
    %c2 = arith.constant 2 : index
    %20 = memref.load %arg2[%c2] : memref<3xf32, #tpu.memory_space<smem>>
    %21 = vector.extract_strided_slice %8 {offsets = [0, 2], sizes = [1, 4], strides = [1, 1]} : vector<1x6xf32> to vector<1x4xf32>
    %22 = vector.broadcast %20 : f32 to vector<1x4xf32>
    %23 = arith.mulf %22, %21 : vector<1x4xf32>
    %24 = arith.addf %19, %23 : vector<1x4xf32>
    %25 = arith.negf %24 : vector<1x4xf32>
    %26 = math.exp %25 : vector<1x4xf32>
    %cst_5 = arith.constant 1.000000e+00 : f32
    %27 = vector.broadcast %cst_5 : f32 to vector<1x4xf32>
    %28 = arith.addf %27, %26 : vector<1x4xf32>
    %29 = arith.divf %27, %28 : vector<1x4xf32>
    %c0_6 = arith.constant 0 : index
    %c0_7 = arith.constant 0 : index
    %c0_8 = arith.constant 0 : index
    %30 = vector.load %arg1[%c0_6, %c0_7, %c0_8] : memref<1x4x256xf32, #tpu.memory_space<vmem>>, vector<1x4x256xf32>
    %31 = vector.shape_cast %29 : vector<1x4xf32> to vector<1x4x1xf32>
    %32 = vector.broadcast %31 : vector<1x4x1xf32> to vector<1x4x256xf32>
    %33 = arith.mulf %30, %32 : vector<1x4x256xf32>
    %c0_9 = arith.constant 0 : index
    %c0_10 = arith.constant 0 : index
    %c0_11 = arith.constant 0 : index
    %34 = vector.load %arg3[%c0_9, %c0_10, %c0_11] : memref<1x4x256xf32, #tpu.memory_space<vmem>>, vector<1x4x256xf32>
    tpu.vector_store %arg3[%c0_9, %c0_10, %c0_11], %33 {strides = array<i32>} : memref<1x4x256xf32, #tpu.memory_space<vmem>>, vector<1x4x256xf32>,
    return
  }
  func.func @transform_0(%arg0: i32) -> (i32, i32, i32) {
    %c0_i32 = arith.constant 0 : i32
    %c0_i32_0 = arith.constant 0 : i32
    %c0_i32_1 = arith.constant 0 : i32
    return %arg0, %c0_i32, %c0_i32_0 : i32, i32, i32
  }
  func.func @transform_1(%arg0: i32) -> i32 {
    %c0_i32 = arith.constant 0 : i32
    %c0_i32_0 = arith.constant 0 : i32
    return %c0_i32 : i32
  }
  func.func @transform_2(%arg0: i32) -> (i32, i32, i32) {
    %c0_i32 = arith.constant 0 : i32
    %c0_i32_0 = arith.constant 0 : i32
    %c0_i32_1 = arith.constant 0 : i32
    return %arg0, %c0_i32, %c0_i32_0 : i32, i32, i32
  }
}

</mosaic_0001>

<llo_original>
// kernel: tpu_custom_call.1
$region0: #{tpu_custom_call.1}
  #allocation0 [shape = 'u32[]', space=smem, size = 0x4, offset = 0x4, fixed_abs, tag = 'smem constant byte address 0x4 - core index']
  #allocation1 [shape = 'u32[144,128]{1,0:T(1,128)}', space=vmem, size = 0x12000, scoped, tag = 'internal scratch']
  %s0 = inlined_call_operand.hbm [shape: f32[2,4,256], index: 0, kind: input, shape index: {}]
  %s1 = inlined_call_operand.vmem [shape: f32[3], index: 1, kind: input, shape index: {}]
  %s2 = inlined_call_operand.hbm [shape: f32[2,4,256], index: 2, kind: output, shape index: {}]
  %s3 = sld [smem:[#allocation0]]
  $region49: #{tpu_custom_call.1} parent=0
    _
  %s5 = ssub.s32 1, %s3
  %s6 = scalar_select 0, %s5, %s3
  $region1: #{tpu_custom_call.1} parent=0
    #allocation2 [shape = 'u8[8192]{0}', space=vmem, size = 0x2000, scoped, tag = 'input window, operand 0']
    #allocation3 [shape = 's32[2]{0}', space=sflag, size = 0x8, scoped, tag = 'scoped memory for tpu_custom_call.1']
    #allocation4 [shape = 's32[2]{0}', space=sflag, size = 0x8, scoped, tag = 'scoped memory for tpu_custom_call.1']
    #allocation5 [shape = 's32[2]{0}', space=sflag, size = 0x8, scoped, tag = 'scoped memory for tpu_custom_call.1']
    #allocation6 [shape = 'u8[512]{0}', space=smem, size = 0x200, scoped, tag = 'input window, operand 1, single buffered']
    #allocation7 [shape = 'u8[8192]{0}', space=vmem, size = 0x2000, scoped, tag = 'output window, operand 0']
    %7 = vsyncpa [#allocation3], 0
    %s8 = scalar_lea.sflag [#allocation3], 1
    %9 = vsyncpa %s8, 0
    %10 = vsyncpa [#allocation5], 0
    %11 = vsyncpa [#allocation4], 0
    %s12 = scalar_lea.sflag [#allocation4], 1
    %13 = vsyncpa %s12, 0
    loop: start=0, step=1, limit=4
    $region2: #{tpu_custom_call.1} parent=1 // loop_pre_header
      _
    $region3: #{tpu_custom_call.1} parent=1 // loop_header
      %s15 = sphi 0, %s19
      %p16 = scmp.ge.s32.totalorder %s15, 4
      %s25 = sphi 0, %s27
      %s28 = sphi 0, %s25
      %s29 = sphi 0, %s28
      %s45 = sphi 0, %s29
      %s49 = sphi 0, %s49
      %s51 = sphi 0, %s49
      %s52 = sphi 0, %s51
      %s66 = sphi 0, %s52
      %s72 = sphi 0, %s74
      %s75 = sphi 0, %s72
      %s76 = sphi 0, %s75
      %s92 = sphi 0, %s76
    $region4: #{tpu_custom_call.1} parent=1 // loop_header_branch
      %18 = sbr.rel (%p16) target = $region8
    $region5: #{tpu_custom_call.1} parent=1 // loop_body
      %s20 = ssub.s32 %s15, 1
      %s21 = ssub.s32 %s15, 2
      %s22 = sadd.s32 %s15, 1
      %s23 = ssub.s32 %s15, %s22
      %p24 = scmp.eq.s32.totalorder %s23, 0
      %s26 = sadd.s32 %s25, 1
      %s27 = scalar_select %p24, %s25, %s26
      %p30 = pneg %p24
      %p31 = scmp.eq.s32.totalorder %s15, 1
      %p32 = por %p30, %p31
      %p33 = scmp.ne.s32.totalorder %s25, %s28
      %p34 = scmp.eq.s32.totalorder %s15, 0
      %p35 = por %p33, %p34
      %p36 = scmp.ne.s32.totalorder %s25, %s28
      %p37 = scmp.eq.s32.totalorder %s20, 1
      %p38 = por %p36, %p37
      %p39 = scmp.ne.s32.totalorder %s28, %s29
      %p40 = scmp.eq.s32.totalorder %s20, 0
      %p41 = por %p39, %p40
      %p42 = scmp.ne.s32.totalorder %s28, %s29
      %p43 = scmp.eq.s32.totalorder %s21, 1
      %p44 = por %p42, %p43
      %p46 = scmp.ne.s32.totalorder %s29, %s45
      %p47 = scmp.eq.s32.totalorder %s21, 0
      %p48 = por %p46, %p47
      %s50 = sadd.s32 %s49, 1
      %p53 = scmp.eq.s32.totalorder %s15, 1
      %p54 = scmp.ne.s32.totalorder %s49, %s51
      %p55 = scmp.eq.s32.totalorder %s15, 0
      %p56 = por %p54, %p55
      %p57 = scmp.ne.s32.totalorder %s49, %s51
      %p58 = scmp.eq.s32.totalorder %s20, 1
      %p59 = por %p57, %p58
      %p60 = scmp.ne.s32.totalorder %s51, %s52
      %p61 = scmp.eq.s32.totalorder %s20, 0
      %p62 = por %p60, %p61
      %p63 = scmp.ne.s32.totalorder %s51, %s52
      %p64 = scmp.eq.s32.totalorder %s21, 1
      %p65 = por %p63, %p64
      %p67 = scmp.ne.s32.totalorder %s52, %s66
      %p68 = scmp.eq.s32.totalorder %s21, 0
      %p69 = por %p67, %p68
      %s70 = ssub.s32 %s15, %s22
      %p71 = scmp.eq.s32.totalorder %s70, 0
      %s73 = sadd.s32 %s72, 1
      %s74 = scalar_select %p71, %s72, %s73
      %p77 = pneg %p71
      %p78 = scmp.eq.s32.totalorder %s15, 1
      %p79 = por %p77, %p78
      %p80 = scmp.ne.s32.totalorder %s72, %s75
      %p81 = scmp.eq.s32.totalorder %s15, 0
      %p82 = por %p80, %p81
      %p83 = scmp.ne.s32.totalorder %s72, %s75
      %p84 = scmp.eq.s32.totalorder %s20, 1
      %p85 = por %p83, %p84
      %p86 = scmp.ne.s32.totalorder %s75, %s76
      %p87 = scmp.eq.s32.totalorder %s20, 0
      %p88 = por %p86, %p87
      %p89 = scmp.ne.s32.totalorder %s75, %s76
      %p90 = scmp.eq.s32.totalorder %s21, 1
      %p91 = por %p89, %p90
      %p93 = scmp.ne.s32.totalorder %s76, %s92
      %p94 = scmp.eq.s32.totalorder %s21, 0
      %p95 = por %p93, %p94
      %p96 = scmp.le.s32.totalorder 1, %s15
      %p97 = scmp.lt.s32.totalorder %s15, 3
      %p98 = pnand %p96, %p97
      %p99 = pneg %p98
      // Predicated region
      $region9: #{tpu_custom_call.1} parent=5 // pred_check
        _
      $region10: #{tpu_custom_call.1} parent=5 // pred_check_branch
        %101 = sbr.rel (%p98) target = $region12
      $region11: #{tpu_custom_call.1} parent=5 // pred_region
        %s102 = ssub.s32 %s15, 1
        // Predicated region
        $region13: #{tpu_custom_call.1} parent=11 // pred_check
          %p103 = pneg %p62
        $region14: #{tpu_custom_call.1} parent=11 // pred_check_branch
          %105 = sbr.rel (%p103) target = $region16
        $region15: #{tpu_custom_call.1} parent=11 // pred_region
          %s107 = ssub.s32 16, 16
          %108 = vsyncadd [#allocation5], %s107
          %s110 = sshll.u32 %s1, 4
          %s111 = int_to_ptr.vmem [resolvable:$true] %s110
          %113 = dma.vmem_to_smem %s111, 16, [#allocation6], [#allocation5]
        $region16: #{tpu_custom_call.1} parent=11 // pred_fallthru
          _
      $region12: #{tpu_custom_call.1} parent=5 // pred_fallthru
        _
      %p114 = scmp.lt.s32.totalorder %s15, 2
      // Predicated region
      $region17: #{tpu_custom_call.1} parent=5 // pred_check
        %p115 = pneg %p114
      $region18: #{tpu_custom_call.1} parent=5 // pred_check_branch
        %117 = sbr.rel (%p115) target = $region20
      $region19: #{tpu_custom_call.1} parent=5 // pred_region
        // Predicated region
        $region21: #{tpu_custom_call.1} parent=19 // pred_check
          %p118 = pneg %p35
        $region22: #{tpu_custom_call.1} parent=19 // pred_check_branch
          %120 = sbr.rel (%p118) target = $region24
        $region23: #{tpu_custom_call.1} parent=19 // pred_region
          %s121 = sand.u32 %s25, 1
          %s122 = scalar_lea.sflag [#allocation3], %s121
          %s123 = sand.u32 %s25, 1
          %s124 = smul.addr %s123, 8
          %s125 = scalar_lea.vmem [#allocation2], %s124
          %s127 = ssub.s32 128, 128
          %128 = vsyncadd %s122, %s127
          %s129 = smul.addr %s15, 2
          %s130 = smul.addr %s129, 64
          %s131 = scalar_lea.hbm %s0, %s130
          %s133 = sshll.u32 %s125, 4
          %s134 = int_to_ptr.vmem [resolvable:$true] %s133
          %136 = dma.hbm_to_vmem [thread:$0]  %s131, 128, %s134, %s122
        $region24: #{tpu_custom_call.1} parent=19 // pred_fallthru
          _
      $region20: #{tpu_custom_call.1} parent=5 // pred_fallthru
        _
      %p137 = scmp.le.s32.totalorder 1, %s15
      %p138 = scmp.lt.s32.totalorder %s15, 3
      %p139 = pnand %p137, %p138
      %p140 = pneg %p139
      // Predicated region
      $region25: #{tpu_custom_call.1} parent=5 // pred_check
        _
      $region26: #{tpu_custom_call.1} parent=5 // pred_check_branch
        %142 = sbr.rel (%p139) target = $region28
      $region27: #{tpu_custom_call.1} parent=5 // pred_region
        %s143 = ssub.s32 %s15, 1
        %s144 = sand.u32 %s28, 1
        %s145 = scalar_lea.sflag [#allocation3], %s144
        %s146 = sand.u32 %s28, 1
        %s147 = smul.addr %s146, 8
        %s148 = scalar_lea.vmem [#allocation2], %s147
        // Predicated region
        $region29: #{tpu_custom_call.1} parent=27 // pred_check
          %p149 = pneg %p41
        $region30: #{tpu_custom_call.1} parent=27 // pred_check_branch
          %151 = sbr.rel (%p149) target = $region32
        $region31: #{tpu_custom_call.1} parent=27 // pred_region
          %152 = dma.done %s145, 128
        $region32: #{tpu_custom_call.1} parent=27 // pred_fallthru
          _
        // Predicated region
        $region33: #{tpu_custom_call.1} parent=27 // pred_check
          %p153 = pneg %p62
        $region34: #{tpu_custom_call.1} parent=27 // pred_check_branch
          %155 = sbr.rel (%p153) target = $region36
        $region35: #{tpu_custom_call.1} parent=27 // pred_region
          %156 = dma.done [#allocation5], 16
        $region36: #{tpu_custom_call.1} parent=27 // pred_fallthru
          _
        %157 = sfence
        %s158 = sand.u32 %s28, 1
        %s159 = scalar_lea.sflag [#allocation3], %s158
        %s160 = sand.u32 %s28, 1
        %s161 = smul.addr %s160, 8
        %s162 = scalar_lea.vmem [#allocation2], %s161
        %p163 = pneg %p41
        %p164 = pneg %p38
        %p165 = pneg %p62
        %p166 = pneg %p59
        %p167 = pneg %p88
        %p168 = pneg %p85
        %s169 = sand.u32 %s75, 1
        %s170 = scalar_lea.sflag [#allocation4], %s169
        %s171 = sand.u32 %s75, 1
        %s172 = smul.addr %s171, 8
        %s173 = scalar_lea.vmem [#allocation7], %s172
        %v174 = vld [vmem:[%s148] sm:$0xff]
        %v176 = vcombine.high %v174, %v174
        %vm178 = vcmask 1043456
        %v179 = vsel %vm178, %v174, 0.0
        %v180 = vsel %vm178, %v176, 0.0
        %v181 = vadd.f32 %v179, %v180
        %182 = vadd.xlane.f32.xlu0 %v181
        %v183 = vpop.xlane.xlu0 %182
        %v184 = vmul.f32 %v183, 0.00390625
        %v186 = vlaneseq
        %v187 = vand.u32 %v186, 127
        %v188 = vadd.s32 %v187, 4294967295
        %v189 = vlaneseq
        %v190 = vshrl.u32 %v189, 7
        %v191 = vsub.s32 %v188, %v190
        %v192 = vrot.slane %v184, %v191
        %vm194 = vcmask 7168
        %v195 = vsel %vm194, 0.0, %v192
        %vm196 = vcmask 39936
        %v197 = vsel %vm196, %v195, 0.0
        %s198 = sld [smem:[#allocation6]]
        %v199 = vstv %s198
        %v200 = vmul.f32 %v199, %v197
        %v201 = vadd.f32 %v200, 0.0
        %s202 = sld [smem:[#allocation6 + $0x1]]
        %v203 = vstv %s202
        %v204 = vmul.f32 %v203, %v197
        %206 = vrot.lane.b32.xlu0 %v204, 127
        %v207 = vpop.permute.xlu0 %206
        %v209 = vadd.f32 %v201, %v207
        %s210 = sld [smem:[#allocation6 + $0x2]]
        %v211 = vstv %s210
        %v212 = vmul.f32 %v211, %v197
        %214 = vrot.lane.b32.xlu0 %v212, 126
        %v215 = vpop.permute.xlu0 %214
        %v217 = vadd.f32 %v209, %v215
        %v218 = vxor.u32 %v217, 2147483648
        %v219 = vmul.f32 %v218, 1.442695
        %v220 = vpow.pop %v219
        %v221 = vadd.f32 %v220, 1.0
        %v222 = vrcp.pop %v221
        %v223 = vmul.f32 1.0, %v222
        %v224 = vlaneseq
        %v225 = vshrl.u32 %v224, 7
        %v226 = vsub.s32 0, %v225
        %v227 = vrot.slane %v223, %v226
        %229 = vbcast.lane.b32.xlu0 %v227, 256
        %v230 = vpop.permute.xlu0 %229
        %v233 = vunpack.c.l.s4 839922192
        %v234 = vunpack.c.0.s8 %v233
        %v235 = vlaneseq
        %v236 = vshrl.u32 %v235, 7
        %v237 = vsub.s32 %v234, %v236
        %v238 = vrot.slane %v230, %v237
        %v240 = vmul.f32 %v174, %v238
        %241 = vst [vmem:[%s173] sm:$0xff] %v240
        %s242 = sand.u32 %s75, 1
        %s243 = scalar_lea.sflag [#allocation4], %s242
        %s244 = sand.u32 %s75, 1
        %s245 = smul.addr %s244, 8
        %s246 = scalar_lea.vmem [#allocation7], %s245
        // Predicated region
        $region37: #{tpu_custom_call.1} parent=27 // pred_check
          %p247 = pneg %p85
        $region38: #{tpu_custom_call.1} parent=27 // pred_check_branch
          %249 = sbr.rel (%p247) target = $region40
        $region39: #{tpu_custom_call.1} parent=27 // pred_region
          %s251 = ssub.s32 128, 128
          %252 = vsyncadd %s243, %s251
          %s253 = smul.addr %s20, 2
          %s254 = smul.addr %s253, 64
          %s255 = scalar_lea.hbm %s2, %s254
          %s257 = sshll.u32 %s246, 4
          %s258 = int_to_ptr.vmem [resolvable:$true] %s257
          %260 = dma.vmem_to_hbm [thread:$0]  %s258, 128, %s255, %s243
        $region40: #{tpu_custom_call.1} parent=27 // pred_fallthru
          _
      $region28: #{tpu_custom_call.1} parent=5 // pred_fallthru
        _
      %p261 = scmp.le.s32.totalorder 2, %s15
      // Predicated region
      $region41: #{tpu_custom_call.1} parent=5 // pred_check
        %p262 = pneg %p261
      $region42: #{tpu_custom_call.1} parent=5 // pred_check_branch
        %264 = sbr.rel (%p262) target = $region44
      $region43: #{tpu_custom_call.1} parent=5 // pred_region
        %s265 = ssub.s32 %s15, 2
        // Predicated region
        $region45: #{tpu_custom_call.1} parent=43 // pred_check
          %p266 = pneg %p91
        $region46: #{tpu_custom_call.1} parent=43 // pred_check_branch
          %268 = sbr.rel (%p266) target = $region48
        $region47: #{tpu_custom_call.1} parent=43 // pred_region
          %s269 = sand.u32 %s76, 1
          %s270 = scalar_lea.sflag [#allocation4], %s269
          %s271 = sand.u32 %s76, 1
          %s272 = smul.addr %s271, 8
          %s273 = scalar_lea.vmem [#allocation7], %s272
          %274 = dma.done %s270, 128
        $region48: #{tpu_custom_call.1} parent=43 // pred_fallthru
          _
      $region44: #{tpu_custom_call.1} parent=5 // pred_fallthru
        _
    $region6: #{tpu_custom_call.1} parent=1 // loop_footer
      %s19 = sadd.s32 1, %s15
    $region7: #{tpu_custom_call.1} parent=1 // loop_footer_branch
      %14 = sbr.rel target = $region3
    $region8: #{tpu_custom_call.1} parent=1 // loop_exit
      _
    %275 = vsyncpa [#allocation3], 1
    %s276 = scalar_lea.sflag [#allocation3], 1
    %277 = vsyncpa %s276, 1
    %278 = vsyncpa [#allocation4], 1
    %s279 = scalar_lea.sflag [#allocation4], 1
    %280 = vsyncpa %s279, 1
    %281 = vsyncpa [#allocation5], 1
    %s282 = scalar_lea.sflag [#allocation5], 1
    %283 = vsyncpa %s282, 1

</llo_original>
